<compile_context>
chip_gen: v7x
topology: tpu7x:2x2x1
jax: 0.10.0
libtpu: 0.0.40
codegen_flags: <defaults>
</compile_context>

<pallas_src>
import jax
import jax.numpy as jnp
from jax import lax
from jax.experimental import pallas as pl
from jax.experimental.pallas import tpu as pltpu

LANES = 128
SUBLANES = 8
MAX_TILE_ROWS = 1024   # 1024*128*4B = 512 KiB per f32 input per buffer
NUM_CORES = 2          # v7x has 2 TensorCores; degenerate (sequential) on v5e/v6e


def _make_mse_kernel(tile_rows: int, tiles_per_core: int, valid_rows: int,
                     needs_mask: bool):
    """Sum of squared differences, accumulated into an (8,128) output block."""

    def kernel(a_ref, b_ref, o_ref):
        i = pl.program_id(1)  # reduction ("arbitrary") axis

        @pl.when(i == 0)
        def _():
            o_ref[...] = jnp.zeros_like(o_ref)

        d = a_ref[...].astype(jnp.float32) - b_ref[...].astype(jnp.float32)
        sq = d * d

        if needs_mask:
            # Zero out rows that fall outside the real array: partial boundary
            # tiles and clamped duplicate tiles (when n_tiles does not divide
            # evenly across cores) contribute nothing.
            tile_idx = pl.program_id(0) * tiles_per_core + i
            row_ids = tile_idx * tile_rows + lax.broadcasted_iota(
                jnp.int32, sq.shape, 0)
            sq = jnp.where(row_ids < valid_rows, sq, 0.0)

        # Sublane-aligned partial sums (VPU only); cross-lane reduce deferred
        # to the wrapper.
        o_ref[...] += jnp.sum(
            sq.reshape(tile_rows // SUBLANES, SUBLANES, LANES), axis=0)

    return kernel


def contrastive_loss(e_c_j: jax.Array, e_c_k: jax.Array,
                     margin: float = 1.0) -> jax.Array:
    """mean((e_c_j - e_c_k)**2). `margin` is unused in the reference forward."""
    assert e_c_j.shape == e_c_k.shape, (e_c_j.shape, e_c_k.shape)
    total = e_c_j.size
    assert total > 0

    # Free, copy-less flatten (no dtype cast here; the kernel casts per tile).
    a = jnp.ravel(e_c_j)
    b = jnp.ravel(e_c_k)

    chunk = SUBLANES * LANES  # 1024
    if total % chunk != 0:
        # Rare ragged case: pad to the next (8,128)-aligned length so the flat
        # view reshapes for free into lane-dense rows.  Zeros add 0 to the sum.
        padded = pl.cdiv(total, chunk) * chunk
        a = jnp.pad(a, (0, padded - total))
        b = jnp.pad(b, (0, padded - total))

    rows = a.size // LANES          # multiple of SUBLANES by construction
    a = a.reshape(rows, LANES)      # free (contiguous) reshape
    b = b.reshape(rows, LANES)

    tile_rows = min(MAX_TILE_ROWS, rows)          # multiple of 8
    n_tiles = pl.cdiv(rows, tile_rows)
    nc = NUM_CORES if n_tiles >= NUM_CORES else 1
    tiles_per_core = pl.cdiv(n_tiles, nc)
    needs_mask = (rows % tile_rows != 0) or (nc * tiles_per_core != n_tiles)

    def in_map(c, i):
        # Clamp so duplicate / boundary tiles never index past the array; their
        # contribution is masked to zero inside the kernel.
        return (jnp.minimum(c * tiles_per_core + i, n_tiles - 1), 0)

    bytes_in = total * (jnp.dtype(e_c_j.dtype).itemsize
                        + jnp.dtype(e_c_k.dtype).itemsize)
    cost = pl.CostEstimate(
        flops=3 * total,                       # sub, mul, add per element
        transcendentals=0,
        bytes_accessed=bytes_in + nc * SUBLANES * LANES * 4,
    )

    partials = pl.pallas_call(
        _make_mse_kernel(tile_rows, tiles_per_core, rows, needs_mask),
        out_shape=jax.ShapeDtypeStruct((nc * SUBLANES, LANES), jnp.float32),
        grid_spec=pltpu.PrefetchScalarGridSpec(
            num_scalar_prefetch=0,
            grid=(nc, tiles_per_core),
            in_specs=[
                pl.BlockSpec((tile_rows, LANES), in_map),
                pl.BlockSpec((tile_rows, LANES), in_map),
            ],
            out_specs=pl.BlockSpec((SUBLANES, LANES), lambda c, i: (c, 0)),
        ),
        compiler_params=pltpu.CompilerParams(
            dimension_semantics=("parallel", "arbitrary"),
        ),
        cost_estimate=cost,
    )(a, b)

    # Single tiny cross-lane reduction + divide by the ORIGINAL element count.
    return jnp.sum(partials) * (1.0 / float(total))


if __name__ == "__main__":
    key = jax.random.PRNGKey(0)
    k1, k2 = jax.random.split(key)

    # Small embedding-like inputs (NCHW convention from the surrounding arch).
    shape = (2, 4, 16, 16)
    e_c_j = jax.random.normal(k1, shape, dtype=jnp.float32)
    e_c_k = jax.random.normal(k2, shape, dtype=jnp.float32)

    loss = contrastive_loss(e_c_j, e_c_k, margin=1.0)
    loss = jax.block_until_ready(loss)

    ref = jnp.mean((e_c_j - e_c_k) ** 2)
    assert jnp.allclose(loss, ref, rtol=1e-6, atol=1e-6), (loss, ref)

    # Extra coverage of the non-trivial paths (still modest sizes):
    #  - ragged element count (pads to 1024-multiple)
    #  - multi-tile with uneven split across the 2-way parallel axis
    #  - partial last tile (rows % tile_rows != 0)
    for extra_shape in [(3, 5, 7, 11), (2, 3, 256, 256), (2, 4, 129, 128)]:
        ka, kb = jax.random.split(jax.random.PRNGKey(extra_shape[-1]))
        x = jax.random.normal(ka, extra_shape, dtype=jnp.float32)
        y = jax.random.normal(kb, extra_shape, dtype=jnp.float32)
        got = jax.block_until_ready(contrastive_loss(x, y))
        want = jnp.mean((x - y) ** 2)
        assert jnp.allclose(got, want, rtol=2e-5, atol=1e-6), (extra_shape, got, want)

    print("KERNEL_OK")
</pallas_src>

<mosaic_0001>
module attributes {stable_mosaic.version = 11 : i64} {
  func.func @kernel(%arg0: i32, %arg1: i32, %arg2: memref<16x128xf32, #tpu.memory_space<vmem>>, %arg3: memref<16x128xf32, #tpu.memory_space<vmem>>, %arg4: memref<8x128xf32, #tpu.memory_space<vmem>>) attributes {dimension_semantics = [#tpu.dimension_semantics<parallel>, #tpu.dimension_semantics<arbitrary>], iteration_bounds = array<i64: 1, 1>, scalar_prefetch = 0 : i64, scratch_operands = 0 : i64, tpu.core_type = #tpu.core_type<tc>, window_params = [{transform_indices = @transform_0, window_bounds = array<i64: 16, 128>}, {transform_indices = @transform_1, window_bounds = array<i64: 16, 128>}, {transform_indices = @transform_2, window_bounds = array<i64: 8, 128>}]} {
    %c0_i32 = arith.constant 0 : i32
    %0 = arith.cmpi eq, %arg1, %c0_i32 : i32
    %1 = arith.extui %0 : i1 to i32
    %c0_i32_0 = arith.constant 0 : i32
    %2 = arith.cmpi ne, %1, %c0_i32_0 : i32
    scf.if %2 {
      %cst_8 = arith.constant 0.000000e+00 : f32
      %12 = vector.broadcast %cst_8 : f32 to vector<8x128xf32>
      %c0_9 = arith.constant 0 : index
      %c0_10 = arith.constant 0 : index
      %13 = vector.load %arg4[%c0_9, %c0_10] : memref<8x128xf32, #tpu.memory_space<vmem>>, vector<8x128xf32>
      tpu.vector_store %arg4[%c0_9, %c0_10], %12 {strides = array<i32>} : memref<8x128xf32, #tpu.memory_space<vmem>>, vector<8x128xf32>,
    } else {
    }
    %c0 = arith.constant 0 : index
    %c0_1 = arith.constant 0 : index
    %3 = vector.load %arg2[%c0, %c0_1] : memref<16x128xf32, #tpu.memory_space<vmem>>, vector<16x128xf32>
    %c0_2 = arith.constant 0 : index
    %c0_3 = arith.constant 0 : index
    %4 = vector.load %arg3[%c0_2, %c0_3] : memref<16x128xf32, #tpu.memory_space<vmem>>, vector<16x128xf32>
    %5 = arith.subf %3, %4 : vector<16x128xf32>
    %6 = arith.mulf %5, %5 : vector<16x128xf32>
    %c0_4 = arith.constant 0 : index
    %c0_5 = arith.constant 0 : index
    %7 = vector.load %arg4[%c0_4, %c0_5] : memref<8x128xf32, #tpu.memory_space<vmem>>, vector<8x128xf32>
    %8 = vector.shape_cast %6 : vector<16x128xf32> to vector<2x8x128xf32>
    %cst = arith.constant dense<0.000000e+00> : vector<8x128xf32>
    %9 = vector.multi_reduction <add>, %8, %cst [0] : vector<2x8x128xf32> to vector<8x128xf32>
    %10 = arith.addf %7, %9 : vector<8x128xf32>
    %c0_6 = arith.constant 0 : index
    %c0_7 = arith.constant 0 : index
    %11 = vector.load %arg4[%c0_6, %c0_7] : memref<8x128xf32, #tpu.memory_space<vmem>>, vector<8x128xf32>
    tpu.vector_store %arg4[%c0_6, %c0_7], %10 {strides = array<i32>} : memref<8x128xf32, #tpu.memory_space<vmem>>, vector<8x128xf32>,
    return
  }
  func.func @transform_0(%arg0: i32, %arg1: i32) -> (i32, i32) {
    %c1_i32 = arith.constant 1 : i32
    %0 = arith.muli %arg0, %c1_i32 : i32
    %1 = arith.addi %0, %arg1 : i32
    %c0_i32 = arith.constant 0 : i32
    %2 = arith.minsi %1, %c0_i32 : i32
    %c0_i32_0 = arith.constant 0 : i32
    %c0_i32_1 = arith.constant 0 : i32
    return %2, %c0_i32_0 : i32, i32
  }
  func.func @transform_1(%arg0: i32, %arg1: i32) -> (i32, i32) {
    %c1_i32 = arith.constant 1 : i32
    %0 = arith.muli %arg0, %c1_i32 : i32
    %1 = arith.addi %0, %arg1 : i32
    %c0_i32 = arith.constant 0 : i32
    %2 = arith.minsi %1, %c0_i32 : i32
    %c0_i32_0 = arith.constant 0 : i32
    %c0_i32_1 = arith.constant 0 : i32
    return %2, %c0_i32_0 : i32, i32
  }
  func.func @transform_2(%arg0: i32, %arg1: i32) -> (i32, i32) {
    %c0_i32 = arith.constant 0 : i32
    %c0_i32_0 = arith.constant 0 : i32
    return %arg0, %c0_i32 : i32, i32
  }
}

</mosaic_0001>

<llo_original>
// kernel: tpu_custom_call.1
$region0: #{tpu_custom_call.1}
  #allocation0 [shape = 'u32[]', space=smem, size = 0x4, offset = 0x4, fixed_abs, tag = 'smem constant byte address 0x4 - core index']
  #allocation1 [shape = 'u32[144,128]{1,0:T(1,128)}', space=vmem, size = 0x12000, scoped, tag = 'internal scratch']
  %s0 = inlined_call_operand.hbm [shape: f32[16,128], index: 0, kind: input, shape index: {}]
  %s1 = inlined_call_operand.hbm [shape: f32[16,128], index: 1, kind: input, shape index: {}]
  %s2 = inlined_call_operand.hbm [shape: f32[8,128], index: 2, kind: output, shape index: {}]
  %s3 = sld [smem:[#allocation0]]
  $region30: #{tpu_custom_call.1} parent=0
    _
  %s5 = ssub.s32 1, %s3
  %s6 = scalar_select 0, %s5, %s3
  $region1: #{tpu_custom_call.1} parent=0
    #allocation2 [shape = 'u8[8192]{0}', space=vmem, size = 0x2000, scoped, tag = 'input window, operand 0, single buffered']
    #allocation3 [shape = 's32[1]{0}', space=sflag, size = 0x4, scoped, tag = 'scoped memory for tpu_custom_call.1']
    #allocation4 [shape = 's32[1]{0}', space=sflag, size = 0x4, scoped, tag = 'scoped memory for tpu_custom_call.1']
    #allocation5 [shape = 'u8[8192]{0}', space=vmem, size = 0x2000, scoped, tag = 'input window, operand 1, single buffered']
    #allocation6 [shape = 's32[1]{0}', space=sflag, size = 0x4, scoped, tag = 'scoped memory for tpu_custom_call.1']
    #allocation7 [shape = 'u8[4096]{0}', space=vmem, size = 0x1000, scoped, tag = 'output window, operand 0, single buffered']
    %7 = vsyncpa [#allocation3], 0
    %8 = vsyncpa [#allocation6], 0
    %9 = vsyncpa [#allocation4], 0
    // Predicated region
    $region2: #{tpu_custom_call.1} parent=1 // pred_check
      _
    $region3: #{tpu_custom_call.1} parent=1 // pred_check_branch
      %11 = sbr.rel (0) target = $region5
    $region4: #{tpu_custom_call.1} parent=1 // pred_region
      %s12 = sadd.s32 0, 0
      %p13 = scmp.lt.s32.totalorder %s12, 0
      %s14 = scalar_select %p13, %s12, 0
      %s15 = smul.u32 2, %s14
      %s17 = ssub.s32 256, 256
      %18 = vsyncadd [#allocation3], %s17
      %s19 = smul.addr %s15, 128
      %s20 = scalar_lea.hbm %s0, %s19
      %s21 = sshll.u32 [#allocation2], 4
      %s22 = int_to_ptr.vmem [resolvable:$true] %s21
      %27 = dma.hbm_to_vmem [thread:$0]  %s20, 256, %s22, [#allocation3], 128, 128, 8
    $region5: #{tpu_custom_call.1} parent=1 // pred_fallthru
      _
    // Predicated region
    $region6: #{tpu_custom_call.1} parent=1 // pred_check
      _
    $region7: #{tpu_custom_call.1} parent=1 // pred_check_branch
      %29 = sbr.rel (0) target = $region9
    $region8: #{tpu_custom_call.1} parent=1 // pred_region
      %s30 = sadd.s32 0, 0
      %p31 = scmp.lt.s32.totalorder %s30, 0
      %s32 = scalar_select %p31, %s30, 0
      %s33 = smul.u32 2, %s32
      %s35 = ssub.s32 256, 256
      %36 = vsyncadd [#allocation6], %s35
      %s37 = smul.addr %s33, 128
      %s38 = scalar_lea.hbm %s1, %s37
      %s39 = sshll.u32 [#allocation5], 4
      %s40 = int_to_ptr.vmem [resolvable:$true] %s39
      %45 = dma.hbm_to_vmem [thread:$0]  %s38, 256, %s40, [#allocation6], 128, 128, 8
    $region9: #{tpu_custom_call.1} parent=1 // pred_fallthru
      _
    // Predicated region
    $region10: #{tpu_custom_call.1} parent=1 // pred_check
      _
    $region11: #{tpu_custom_call.1} parent=1 // pred_check_branch
      %47 = sbr.rel (0) target = $region13
    $region12: #{tpu_custom_call.1} parent=1 // pred_region
      %48 = dma.done [#allocation3], 256
    $region13: #{tpu_custom_call.1} parent=1 // pred_fallthru
      _
    // Predicated region
    $region14: #{tpu_custom_call.1} parent=1 // pred_check
      _
    $region15: #{tpu_custom_call.1} parent=1 // pred_check_branch
      %50 = sbr.rel (0) target = $region17
    $region16: #{tpu_custom_call.1} parent=1 // pred_region
      %51 = dma.done [#allocation6], 256
    $region17: #{tpu_custom_call.1} parent=1 // pred_fallthru
      _
    %s52 = sadd.s32 0, 0
    %p53 = scmp.lt.s32.totalorder %s52, 0
    %s54 = scalar_select %p53, %s52, 0
    %s55 = smul.u32 2, %s54
    %s56 = sadd.s32 0, 0
    %p57 = scmp.lt.s32.totalorder %s56, 0
    %s58 = scalar_select %p57, %s56, 0
    %s59 = smul.u32 2, %s58
    %p60 = scmp.eq.s32.totalorder 0, 0
    // Predicated region
    $region18: #{tpu_custom_call.1} parent=1 // pred_check
      %p61 = pneg %p60
    $region19: #{tpu_custom_call.1} parent=1 // pred_check_branch
      %63 = sbr.rel (%p61) target = $region21
    $region20: #{tpu_custom_call.1} parent=1 // pred_region
      %64 = vst [vmem:[#allocation7] sm:$0xff] 0.0
    $region21: #{tpu_custom_call.1} parent=1 // pred_fallthru
      _
    %v65 = vld [vmem:[#allocation2] sm:$0xff]
    %v66 = vld [vmem:[#allocation2 + $0x8] sm:$0xff]
    %v67 = vld [vmem:[#allocation5] sm:$0xff]
    %v68 = vld [vmem:[#allocation5 + $0x8] sm:$0xff]
    %v69 = vsub.f32 %v65, %v67
    %v70 = vsub.f32 %v66, %v68
    %v71 = vmul.f32 %v69, %v69
    %v72 = vmul.f32 %v70, %v70
    %v73 = vld [vmem:[#allocation7] sm:$0xff]
    %v74 = vadd.f32 %v71, %v72
    %v75 = vadd.f32 %v73, %v74
    %76 = vst [vmem:[#allocation7] sm:$0xff] %v75
    // Predicated region
    $region22: #{tpu_custom_call.1} parent=1 // pred_check
      _
    $region23: #{tpu_custom_call.1} parent=1 // pred_check_branch
      %78 = sbr.rel (0) target = $region25
    $region24: #{tpu_custom_call.1} parent=1 // pred_region
      %s80 = ssub.s32 128, 128
      %81 = vsyncadd [#allocation4], %s80
      %s83 = sshll.u32 [#allocation7], 4
      %s84 = int_to_ptr.vmem [resolvable:$true] %s83
      %86 = dma.vmem_to_hbm [thread:$0]  %s84, 128, %s2, [#allocation4]
    $region25: #{tpu_custom_call.1} parent=1 // pred_fallthru
      _
    // Predicated region
    $region26: #{tpu_custom_call.1} parent=1 // pred_check
      _
    $region27: #{tpu_custom_call.1} parent=1 // pred_check_branch
      %88 = sbr.rel (0) target = $region29
    $region28: #{tpu_custom_call.1} parent=1 // pred_region
      %89 = dma.done [#allocation4], 128
    $region29: #{tpu_custom_call.1} parent=1 // pred_fallthru
      _
    %90 = vsyncpa [#allocation3], 1
    %91 = vsyncpa [#allocation6], 1
    %92 = vsyncpa [#allocation4], 1

</llo_original>
